<compile_context>
chip_gen: v7x
topology: tpu7x:2x2x1
jax: 0.10.0
libtpu: 0.0.40
codegen_flags: <defaults>
</compile_context>

<pallas_src>
import functools
import math

import jax
import jax.numpy as jnp
from jax import lax
from jax.experimental import pallas as pl
from jax.experimental.pallas import tpu as pltpu

# ~4 MiB input block per grid step: >85% of HBM roofline on v5e/v6e/v7x while
# the double-buffered in+out footprint (<= ~16 MiB) stays inside every
# generation's scoped VMEM once the limit below is applied.
_TARGET_IN_BLOCK_BYTES = 4 * 1024 * 1024


def _round_up(n, m):
    return ((n + m - 1) // m) * m


def _sublane_multiple(dtype):
    # 8 sublanes per vreg at 32-bit; sub-32-bit dtypes pack along sublanes.
    itemsize = jnp.dtype(dtype).itemsize
    return 8 * max(1, 4 // itemsize)


def _largest_dividing_lane_tile(inner, cap):
    # Largest multiple of 128 that divides `inner` and is <= cap.
    best = 128
    cap = max(128, cap)
    t = 128
    while t <= min(inner, cap):
        if inner % t == 0:
            best = t
        t += 128
    return best


def _copy_kernel(x_ref, o_ref):
    # Fast path: the phase selection already happened at the DMA level
    # (BlockSpec index_map), so this is a pure VMEM tile copy.
    o_ref[...] = x_ref[...]


def _strided_select_kernel(x_ref, o_ref, *, period, phase):
    # Fallback: one sublane-strided read (supported on all TPU generations).
    n = o_ref.shape[0]
    o_ref[...] = x_ref[pl.ds(phase, n, stride=period), :]


def decimate(x, period, start=0, dim=-1):
    """y = x indexed with arange(start, T, period) along `dim`."""
    assert period >= 1
    assert start >= 0
    ndim = x.ndim
    d = dim % ndim
    T = x.shape[d]

    L_total = len(range(start, T, period))
    out_full_shape = x.shape[:d] + (L_total,) + x.shape[d + 1:]
    if L_total == 0:
        return jnp.zeros(out_full_shape, x.dtype)

    inner = int(math.prod(x.shape[d + 1:]))

    # Lane-axis decimation (dim == last) and lane-narrow trailing dims have no
    # efficient Mosaic lowering (lane-strided gather / masked vst stores); a
    # single native strided slice already moves only ~|x| + |y| bytes, which is
    # the floor without element-strided DMA -- and beats the old
    # moveaxis->kernel->moveaxis sandwich by >2x.
    # TODO(synk): revisit with an in-kernel lane gather / strided-source DMA
    # once Mosaic supports minor-dim strided loads uniformly across generations.
    if period == 1 or d == ndim - 1 or inner < 128:
        starts = [0] * ndim
        starts[d] = start
        strides = [1] * ndim
        strides[d] = period
        return lax.slice(x, starts, list(x.shape), strides)

    phase = start % period            # 0 <= phase < period
    skip = start // period            # leading kernel rows to drop at the end
    L = len(range(phase, T, period))  # rows produced by the kernel (= L_total + skip)

    outer = int(math.prod(x.shape[:d]))
    x3 = x.reshape(outer, T, inner)   # free reshape, decimation axis on sublanes

    itemsize = jnp.dtype(x.dtype).itemsize
    mult = _sublane_multiple(x.dtype)
    budget = max(1, _TARGET_IN_BLOCK_BYTES // itemsize)   # elems per input block

    use_fast = (T % period == 0) and (inner % 128 == 0)

    if use_fast:
        # DMA-level phase selection: only 1/period of the input is read.
        tile_i = _largest_dividing_lane_tile(inner, cap=budget // mult)
        n_i = inner // tile_i
        tile_l = min(_round_up(L, mult),
                     max(mult, (budget // tile_i) // mult * mult))
        if pl.cdiv(L, tile_l) == 1:
            tile_l = L                                     # full dim, always legal
        n_l = pl.cdiv(L, tile_l)
        # Coalesce the outer axis so each grid step moves ~budget elements.
        tile_o = int(max(1, min(outer, budget // max(1, tile_l * tile_i))))
        n_o = pl.cdiv(outer, tile_o)
        # Keep >= 2 parallel grid steps when possible (v7x has 2 TensorCores).
        if n_o * n_l * n_i == 1 and outer > 1:
            tile_o = pl.cdiv(outer, 2)
            n_o = pl.cdiv(outer, tile_o)
        grid = (n_o, n_l, n_i)
        operand = x3.reshape(outer, L, period * inner)     # free reshape
        in_specs = [pl.BlockSpec(
            (tile_o, tile_l, tile_i),
            lambda o, j, b: (o, j, phase * n_i + b))]
        out_specs = pl.BlockSpec(
            (tile_o, tile_l, tile_i), lambda o, j, b: (o, j, b))
        kernel = _copy_kernel
        in_block_bytes = tile_o * tile_l * tile_i * itemsize
        out_block_bytes = in_block_bytes
    else:
        # Contiguous input blocks + in-kernel sublane-strided selection.
        # TODO(synk): a sublane-strided make_async_copy source (pl.ANY input)
        # would cut HBM reads by period x here; kept as BlockSpec DMA since
        # strided-source DMAs are not uniformly supported across generations.
        max_lane = max(128, (budget // (mult * period)) // 128 * 128)
        tile_i = inner if inner <= max_lane else max_lane
        n_i = pl.cdiv(inner, tile_i)
        rows_budget = max(mult, (budget // (period * tile_i)) // mult * mult)
        tile_l = min(_round_up(L, mult), rows_budget)
        n_l = pl.cdiv(L, tile_l)
        if n_l == 1:
            in_rows, out_rows = T, L        # full-dim blocks, no padding games
        else:
            in_rows, out_rows = tile_l * period, tile_l
        grid = (outer, n_l, n_i)
        operand = x3
        in_specs = [pl.BlockSpec(
            (None, in_rows, tile_i), lambda o, j, b: (o, j, b))]
        out_specs = pl.BlockSpec(
            (None, out_rows, tile_i), lambda o, j, b: (o, j, b))
        kernel = functools.partial(
            _strided_select_kernel, period=period, phase=phase)
        in_block_bytes = in_rows * tile_i * itemsize
        out_block_bytes = out_rows * tile_i * itemsize

    # Double-buffered in + out blocks plus headroom; >= 32 MiB raises v5e's
    # 16 MiB scoped default, <= 56 MiB stays inside v7x's 64 MiB physical VMEM.
    vmem_limit = int(min(56 * 1024 * 1024,
                         max(32 * 1024 * 1024,
                             2 * (in_block_bytes + out_block_bytes)
                             + 8 * 1024 * 1024)))

    y3 = pl.pallas_call(
        kernel,
        out_shape=jax.ShapeDtypeStruct((outer, L, inner), x.dtype),
        grid=grid,
        in_specs=in_specs,
        out_specs=out_specs,
        compiler_params=pltpu.CompilerParams(
            dimension_semantics=("parallel",) * len(grid),
            vmem_limit_bytes=vmem_limit),
    )(operand)

    y = y3.reshape(x.shape[:d] + (L,) + x.shape[d + 1:])
    if skip > 0:
        # TODO(synk): fold `skip` into the row index_map (needs element-granular
        # block offsets); the post-slice only triggers when start >= period.
        y = lax.slice_in_dim(y, skip, L, axis=d)
    return y


class Decimation:
    """Minimal stand-in for diffsptk.Decimation (forward pass only)."""

    def __init__(self, period, start=0, dim=-1):
        assert 1 <= period
        assert 0 <= start
        self.period = period
        self.start = start
        self.dim = dim

    def __call__(self, x):
        return decimate(x, self.period, self.start, self.dim)


if __name__ == "__main__":
    root = jax.random.PRNGKey(0)
    k1, k2, k3 = jax.random.split(root, 3)

    # Primary example: (batch, channels, frames, features), decimate the frame
    # axis. Hits the Pallas fast path: the DMA only fetches every period-th
    # frame, and the outer axis is coalesced into large blocks.
    x = jax.random.normal(k1, (2, 4, 16, 128), dtype=jnp.float32)
    y = jax.block_until_ready(decimate(x, period=2, start=1, dim=2))
    ref = x[:, :, 1::2, :]
    assert y.shape == ref.shape and y.dtype == ref.dtype
    assert bool(jnp.array_equal(y, ref)), "fast-path mismatch"

    # start >= period exercises the phase/skip split on the Pallas fast path.
    y_skip = jax.block_until_ready(decimate(x, period=2, start=3, dim=2))
    assert bool(jnp.array_equal(y_skip, x[:, :, 3::2, :])), "start>=period mismatch"

    # bf16 through the fast path (packed-sublane tiling).
    xb = x.astype(jnp.bfloat16)
    yb = jax.block_until_ready(decimate(xb, period=4, start=2, dim=2))
    assert bool(jnp.array_equal(yb, xb[:, :, 2::4, :])), "bf16 fast-path mismatch"

    # T % period != 0 with outer > 1 -> strided-read fallback path (padded tail).
    xf = jax.random.normal(k3, (2, 4, 15, 128), dtype=jnp.float32)
    yf = jax.block_until_ready(decimate(xf, period=2, start=0, dim=2))
    assert bool(jnp.array_equal(yf, xf[:, :, 0::2, :])), "fallback mismatch"

    # dim = -1 (module default) -> native strided-slice short-circuit.
    x2 = jax.random.normal(k2, (2, 4, 16), dtype=jnp.float32)
    y2 = jax.block_until_ready(decimate(x2, period=3, start=1, dim=-1))
    assert bool(jnp.array_equal(y2, x2[..., 1::3])), "dim=-1 mismatch"
    y3 = jax.block_until_ready(decimate(x2, period=3, start=4, dim=-1))
    assert bool(jnp.array_equal(y3, x2[..., 4::3])), "dim=-1 start>=period mismatch"

    # diffsptk docstring example: ramp(9), Decimation(3, start=1) -> [1, 4, 7].
    y4 = jax.block_until_ready(
        Decimation(3, start=1)(jnp.arange(9, dtype=jnp.float32)))
    assert bool(jnp.array_equal(y4, jnp.array([1.0, 4.0, 7.0]))), "1-D mismatch"

    print("KERNEL_OK")
</pallas_src>

<mosaic_0001>
module attributes {stable_mosaic.version = 11 : i64} {
  func.func @_copy_kernel(%arg0: i32, %arg1: i32, %arg2: i32, %arg3: memref<4x8x128xf32, #tpu.memory_space<vmem>>, %arg4: memref<4x8x128xf32, #tpu.memory_space<vmem>>) attributes {dimension_semantics = [#tpu.dimension_semantics<parallel>, #tpu.dimension_semantics<parallel>, #tpu.dimension_semantics<parallel>], iteration_bounds = array<i64: 2, 1, 1>, scalar_prefetch = 0 : i64, scratch_operands = 0 : i64, tpu.core_type = #tpu.core_type<tc>, window_params = [{transform_indices = @transform_0, window_bounds = array<i64: 4, 8, 128>}, {transform_indices = @transform_1, window_bounds = array<i64: 4, 8, 128>}]} {
    %c0 = arith.constant 0 : index
    %c0_0 = arith.constant 0 : index
    %c0_1 = arith.constant 0 : index
    %0 = vector.load %arg3[%c0, %c0_0, %c0_1] : memref<4x8x128xf32, #tpu.memory_space<vmem>>, vector<4x8x128xf32>
    %c0_2 = arith.constant 0 : index
    %c0_3 = arith.constant 0 : index
    %c0_4 = arith.constant 0 : index
    %1 = vector.load %arg4[%c0_2, %c0_3, %c0_4] : memref<4x8x128xf32, #tpu.memory_space<vmem>>, vector<4x8x128xf32>
    tpu.vector_store %arg4[%c0_2, %c0_3, %c0_4], %0 {strides = array<i32>} : memref<4x8x128xf32, #tpu.memory_space<vmem>>, vector<4x8x128xf32>,
    return
  }
  func.func @transform_0(%arg0: i32, %arg1: i32, %arg2: i32) -> (i32, i32, i32) {
    %c1_i32 = arith.constant 1 : i32
    %0 = arith.addi %c1_i32, %arg2 : i32
    %c0_i32 = arith.constant 0 : i32
    return %arg0, %arg1, %0 : i32, i32, i32
  }
  func.func @transform_1(%arg0: i32, %arg1: i32, %arg2: i32) -> (i32, i32, i32) {
    %c0_i32 = arith.constant 0 : i32
    return %arg0, %arg1, %arg2 : i32, i32, i32
  }
}

</mosaic_0001>

<llo_original>
// kernel: tpu_custom_call.1
$region0: #{tpu_custom_call.1}
  #allocation0 [shape = 'u32[]', space=smem, size = 0x4, offset = 0x4, fixed_abs, tag = 'smem constant byte address 0x4 - core index']
  #allocation1 [shape = 'u32[144,128]{1,0:T(1,128)}', space=vmem, size = 0x12000, scoped, tag = 'internal scratch']
  %s0 = inlined_call_operand.hbm [shape: f32[8,8,256], index: 0, kind: input, shape index: {}]
  %s1 = inlined_call_operand.hbm [shape: f32[8,8,128], index: 1, kind: output, shape index: {}]
  %s2 = sld [smem:[#allocation0]]
  $region41: #{tpu_custom_call.1} parent=0
    _
  %s4 = ssub.s32 1, %s2
  %s5 = scalar_select 0, %s4, %s2
  $region1: #{tpu_custom_call.1} parent=0
    #allocation2 [shape = 'u8[32768]{0}', space=vmem, size = 0x8000, scoped, tag = 'input window, operand 0']
    #allocation3 [shape = 's32[2]{0}', space=sflag, size = 0x8, scoped, tag = 'scoped memory for tpu_custom_call.1']
    #allocation4 [shape = 's32[2]{0}', space=sflag, size = 0x8, scoped, tag = 'scoped memory for tpu_custom_call.1']
    #allocation5 [shape = 'u8[32768]{0}', space=vmem, size = 0x8000, scoped, tag = 'output window, operand 0']
    %6 = vsyncpa [#allocation3], 0
    %s7 = scalar_lea.sflag [#allocation3], 1
    %8 = vsyncpa %s7, 0
    %9 = vsyncpa [#allocation4], 0
    %s10 = scalar_lea.sflag [#allocation4], 1
    %11 = vsyncpa %s10, 0
    loop: start=0, step=1, limit=4
    $region2: #{tpu_custom_call.1} parent=1 // loop_pre_header
      _
    $region3: #{tpu_custom_call.1} parent=1 // loop_header
      %s13 = sphi 0, %s17
      %p14 = scmp.ge.s32.totalorder %s13, 4
      %s20 = sphi 0, %s39
      %s21 = sphi 0, %s35
      %s22 = sphi 0, %s31
      %s23 = sphi 0, %s20
      %s24 = sphi 0, %s21
      %s25 = sphi 0, %s22
      %s26 = sphi 0, %s23
      %s27 = sphi 0, %s24
      %s28 = sphi 0, %s25
      %s48 = sphi 0, %s50
      %s51 = sphi 0, %s48
      %s52 = sphi 0, %s51
      %s68 = sphi 0, %s52
      %s78 = sphi 0, %s80
      %s81 = sphi 0, %s78
      %s82 = sphi 0, %s81
      %s98 = sphi 0, %s82
    $region4: #{tpu_custom_call.1} parent=1 // loop_header_branch
      %16 = sbr.rel (%p14) target = $region8
    $region5: #{tpu_custom_call.1} parent=1 // loop_body
      %s18 = ssub.s32 %s13, 1
      %s19 = ssub.s32 %s13, 2
      %s29 = sadd.s32 1, %s22
      %p30 = scmp.ge.s32.totalorder %s29, 1
      %s31 = scalar_select %p30, 0, %s29
      %s32 = sadd.s32 1, %s21
      %s33 = scalar_select %p30, %s32, %s21
      %p34 = scmp.ge.s32.totalorder %s33, 1
      %s35 = scalar_select %p34, 0, %s33
      %s36 = sadd.s32 1, %s20
      %s37 = scalar_select %p34, %s36, %s20
      %p38 = scmp.ge.s32.totalorder %s37, 2
      %s39 = scalar_select %p38, 0, %s37
      %s40 = sadd.s32 %s22, 1
      %s41 = sadd.s32 %s31, 1
      %s42 = ssub.s32 %s20, %s39
      %s43 = ssub.s32 %s21, %s35
      %s44 = sor.u32 %s42, %s43
      %s45 = ssub.s32 %s40, %s41
      %s46 = sor.u32 %s44, %s45
      %p47 = scmp.eq.s32.totalorder %s46, 0
      %s49 = sadd.s32 %s48, 1
      %s50 = scalar_select %p47, %s48, %s49
      %p53 = pneg %p47
      %p54 = scmp.eq.s32.totalorder %s13, 1
      %p55 = por %p53, %p54
      %p56 = scmp.ne.s32.totalorder %s48, %s51
      %p57 = scmp.eq.s32.totalorder %s13, 0
      %p58 = por %p56, %p57
      %p59 = scmp.ne.s32.totalorder %s48, %s51
      %p60 = scmp.eq.s32.totalorder %s18, 1
      %p61 = por %p59, %p60
      %p62 = scmp.ne.s32.totalorder %s51, %s52
      %p63 = scmp.eq.s32.totalorder %s18, 0
      %p64 = por %p62, %p63
      %p65 = scmp.ne.s32.totalorder %s51, %s52
      %p66 = scmp.eq.s32.totalorder %s19, 1
      %p67 = por %p65, %p66
      %p69 = scmp.ne.s32.totalorder %s52, %s68
      %p70 = scmp.eq.s32.totalorder %s19, 0
      %p71 = por %p69, %p70
      %s72 = ssub.s32 %s20, %s39
      %s73 = ssub.s32 %s21, %s35
      %s74 = sor.u32 %s72, %s73
      %s75 = ssub.s32 %s22, %s31
      %s76 = sor.u32 %s74, %s75
      %p77 = scmp.eq.s32.totalorder %s76, 0
      %s79 = sadd.s32 %s78, 1
      %s80 = scalar_select %p77, %s78, %s79
      %p83 = pneg %p77
      %p84 = scmp.eq.s32.totalorder %s13, 1
      %p85 = por %p83, %p84
      %p86 = scmp.ne.s32.totalorder %s78, %s81
      %p87 = scmp.eq.s32.totalorder %s13, 0
      %p88 = por %p86, %p87
      %p89 = scmp.ne.s32.totalorder %s78, %s81
      %p90 = scmp.eq.s32.totalorder %s18, 1
      %p91 = por %p89, %p90
      %p92 = scmp.ne.s32.totalorder %s81, %s82
      %p93 = scmp.eq.s32.totalorder %s18, 0
      %p94 = por %p92, %p93
      %p95 = scmp.ne.s32.totalorder %s81, %s82
      %p96 = scmp.eq.s32.totalorder %s19, 1
      %p97 = por %p95, %p96
      %p99 = scmp.ne.s32.totalorder %s82, %s98
      %p100 = scmp.eq.s32.totalorder %s19, 0
      %p101 = por %p99, %p100
      %p102 = scmp.le.s32.totalorder 1, %s13
      %p103 = scmp.lt.s32.totalorder %s13, 3
      %p104 = pnand %p102, %p103
      %p105 = pneg %p104
      // Predicated region
      $region9: #{tpu_custom_call.1} parent=5 // pred_check
        _
      $region10: #{tpu_custom_call.1} parent=5 // pred_check_branch
        %107 = sbr.rel (%p104) target = $region12
      $region11: #{tpu_custom_call.1} parent=5 // pred_region
        %s108 = ssub.s32 %s13, 1
      $region12: #{tpu_custom_call.1} parent=5 // pred_fallthru
        _
      %p109 = scmp.lt.s32.totalorder %s13, 2
      // Predicated region
      $region13: #{tpu_custom_call.1} parent=5 // pred_check
        %p110 = pneg %p109
      $region14: #{tpu_custom_call.1} parent=5 // pred_check_branch
        %112 = sbr.rel (%p110) target = $region16
      $region15: #{tpu_custom_call.1} parent=5 // pred_region
        // Predicated region
        $region17: #{tpu_custom_call.1} parent=15 // pred_check
          %p113 = pneg %p58
        $region18: #{tpu_custom_call.1} parent=15 // pred_check_branch
          %115 = sbr.rel (%p113) target = $region20
        $region19: #{tpu_custom_call.1} parent=15 // pred_region
          %s116 = sand.u32 %s48, 1
          %s117 = scalar_lea.sflag [#allocation3], %s116
          %s118 = sand.u32 %s48, 1
          %s119 = smul.addr %s118, 32
          %s120 = scalar_lea.vmem [#allocation2], %s119
          %s121 = sadd.s32 %s22, 1
          %s122 = smul.u32 4, %s20
          %s124 = ssub.s32 512, 512
          %125 = vsyncadd %s117, %s124
          %s126 = smul.addr %s21, 2
          %s127 = sadd.s32 %s121, %s126
          %s128 = smul.addr %s122, 2
          %s129 = sadd.s32 %s127, %s128
          %s130 = smul.addr %s129, 128
          %s131 = scalar_lea.hbm %s0, %s130
          %s132 = sshll.u32 %s120, 4
          %s133 = int_to_ptr.vmem [resolvable:$true] %s132
          %138 = dma.hbm_to_vmem [thread:$0]  %s131, 512, %s133, %s117, 256, 128, 8
        $region20: #{tpu_custom_call.1} parent=15 // pred_fallthru
          _
      $region16: #{tpu_custom_call.1} parent=5 // pred_fallthru
        _
      %p139 = scmp.le.s32.totalorder 1, %s13
      %p140 = scmp.lt.s32.totalorder %s13, 3
      %p141 = pnand %p139, %p140
      %p142 = pneg %p141
      // Predicated region
      $region21: #{tpu_custom_call.1} parent=5 // pred_check
        _
      $region22: #{tpu_custom_call.1} parent=5 // pred_check_branch
        %144 = sbr.rel (%p141) target = $region24
      $region23: #{tpu_custom_call.1} parent=5 // pred_region
        %s145 = ssub.s32 %s13, 1
        %s146 = sand.u32 %s51, 1
        %s147 = scalar_lea.sflag [#allocation3], %s146
        %s148 = sand.u32 %s51, 1
        %s149 = smul.addr %s148, 32
        %s150 = scalar_lea.vmem [#allocation2], %s149
        // Predicated region
        $region25: #{tpu_custom_call.1} parent=23 // pred_check
          %p151 = pneg %p64
        $region26: #{tpu_custom_call.1} parent=23 // pred_check_branch
          %153 = sbr.rel (%p151) target = $region28
        $region27: #{tpu_custom_call.1} parent=23 // pred_region
          %154 = dma.done %s147, 512
        $region28: #{tpu_custom_call.1} parent=23 // pred_fallthru
          _
        %s155 = sand.u32 %s51, 1
        %s156 = scalar_lea.sflag [#allocation3], %s155
        %s157 = sand.u32 %s51, 1
        %s158 = smul.addr %s157, 32
        %s159 = scalar_lea.vmem [#allocation2], %s158
        %p160 = pneg %p64
        %p161 = pneg %p61
        %p162 = pneg %p94
        %p163 = pneg %p91
        %s164 = sand.u32 %s81, 1
        %s165 = scalar_lea.sflag [#allocation4], %s164
        %s166 = sand.u32 %s81, 1
        %s167 = smul.addr %s166, 32
        %s168 = scalar_lea.vmem [#allocation5], %s167
        %s169 = sadd.s32 %s25, 1
        %s170 = smul.u32 4, %s23
        %s171 = smul.u32 4, %s23
        %v172 = vld [vmem:[%s150] sm:$0xff]
        %v173 = vld [vmem:[%s150 + $0x8] sm:$0xff]
        %v174 = vld [vmem:[%s150 + $0x10] sm:$0xff]
        %v175 = vld [vmem:[%s150 + $0x18] sm:$0xff]
        %176 = vst [vmem:[%s168] sm:$0xff] %v172
        %177 = vst [vmem:[%s168 + $0x8] sm:$0xff] %v173
        %178 = vst [vmem:[%s168 + $0x10] sm:$0xff] %v174
        %179 = vst [vmem:[%s168 + $0x18] sm:$0xff] %v175
        %s180 = sand.u32 %s81, 1
        %s181 = scalar_lea.sflag [#allocation4], %s180
        %s182 = sand.u32 %s81, 1
        %s183 = smul.addr %s182, 32
        %s184 = scalar_lea.vmem [#allocation5], %s183
        // Predicated region
        $region29: #{tpu_custom_call.1} parent=23 // pred_check
          %p185 = pneg %p91
        $region30: #{tpu_custom_call.1} parent=23 // pred_check_branch
          %187 = sbr.rel (%p185) target = $region32
        $region31: #{tpu_custom_call.1} parent=23 // pred_region
          %s188 = smul.u32 4, %s23
          %s190 = ssub.s32 512, 512
          %191 = vsyncadd %s181, %s190
          %s192 = sadd.s32 %s25, %s24
          %s193 = sadd.s32 %s192, %s188
          %s194 = smul.addr %s193, 128
          %s195 = scalar_lea.hbm %s1, %s194
          %s196 = sshll.u32 %s184, 4
          %s197 = int_to_ptr.vmem [resolvable:$true] %s196
          %202 = dma.vmem_to_hbm [thread:$0]  %s197, 512, %s195, %s181, 128, 128, 8
        $region32: #{tpu_custom_call.1} parent=23 // pred_fallthru
          _
      $region24: #{tpu_custom_call.1} parent=5 // pred_fallthru
        _
      %p203 = scmp.le.s32.totalorder 2, %s13
      // Predicated region
      $region33: #{tpu_custom_call.1} parent=5 // pred_check
        %p204 = pneg %p203
      $region34: #{tpu_custom_call.1} parent=5 // pred_check_branch
        %206 = sbr.rel (%p204) target = $region36
      $region35: #{tpu_custom_call.1} parent=5 // pred_region
        %s207 = ssub.s32 %s13, 2
        // Predicated region
        $region37: #{tpu_custom_call.1} parent=35 // pred_check
          %p208 = pneg %p97
        $region38: #{tpu_custom_call.1} parent=35 // pred_check_branch
          %210 = sbr.rel (%p208) target = $region40
        $region39: #{tpu_custom_call.1} parent=35 // pred_region
          %s211 = sand.u32 %s82, 1
          %s212 = scalar_lea.sflag [#allocation4], %s211
          %s213 = sand.u32 %s82, 1
          %s214 = smul.addr %s213, 32
          %s215 = scalar_lea.vmem [#allocation5], %s214
          %216 = dma.done %s212, 512
        $region40: #{tpu_custom_call.1} parent=35 // pred_fallthru
          _
      $region36: #{tpu_custom_call.1} parent=5 // pred_fallthru
        _
    $region6: #{tpu_custom_call.1} parent=1 // loop_footer
      %s17 = sadd.s32 1, %s13
    $region7: #{tpu_custom_call.1} parent=1 // loop_footer_branch
      %12 = sbr.rel target = $region3
    $region8: #{tpu_custom_call.1} parent=1 // loop_exit
      _
    %217 = vsyncpa [#allocation3], 1
    %s218 = scalar_lea.sflag [#allocation3], 1
    %219 = vsyncpa %s218, 1
    %220 = vsyncpa [#allocation4], 1
    %s221 = scalar_lea.sflag [#allocation4], 1
    %222 = vsyncpa %s221, 1

</llo_original>
